<compile_context>
chip_gen: v7x
topology: tpu7x:2x2x1
jax: 0.10.0
libtpu: 0.0.40
codegen_flags: <defaults>
</compile_context>

<pallas_src>
import jax
import jax.numpy as jnp
from jax.experimental import pallas as pl
from jax.experimental.pallas import tpu as pltpu


def reinforce_kernel(xT_ref, w1_ref, b1_ref, w2_ref, b2_ref, outT_ref):
    # xT_ref  : [S, TB]   (batch on lanes)
    # w1_ref  : [H, S]    (PyTorch fc1.weight layout)
    # b1_ref  : [H, 1]
    # w2_ref  : [A, H]    (PyTorch fc2.weight layout)
    # b2_ref  : [A, 1]
    # outT_ref: [A, TB]
    xT = xT_ref[...]
    w1 = w1_ref[...]
    S = xT.shape[0]

    # fc1 + bias on the VPU: h^T[H, TB] = b1 + sum_k w1[:, k] (outer) x^T[k, :]
    hT = b1_ref[...] + w1[:, 0:1] * xT[0:1, :]
    for k in range(1, S):           # S is small & static -> fully unrolled
        hT = hT + w1[:, k:k + 1] * xT[k:k + 1, :]
    hT = jnp.maximum(hT, 0.0)

    # fc2 on the MXU (K = H = 128): logits^T [A, TB]
    logitsT = jnp.dot(w2_ref[...], hT, preferred_element_type=jnp.float32)
    logitsT = logitsT + b2_ref[...]

    # softmax over actions (axis 0 = a handful of sublanes), numerically stable
    m = jnp.max(logitsT, axis=0, keepdims=True)
    e = jnp.exp(logitsT - m)
    denom = jnp.sum(e, axis=0, keepdims=True)
    outT_ref[...] = (e * pl.reciprocal(denom, approx=False)).astype(outT_ref.dtype)


def reinforce_forward(x, fc1_w, fc1_b, fc2_w, fc2_b, *, tb=None):
    """Fused REINFORCE policy forward.

    x     : [B, n_states] f32
    fc1_w : [128, n_states] f32, fc1_b: [128] f32   (PyTorch nn.Linear layout)
    fc2_w : [n_actions, 128] f32, fc2_b: [n_actions] f32
    Returns action probabilities, [B, n_actions] f32.
    """
    B, S = x.shape
    H, _ = fc1_w.shape
    A, _ = fc2_w.shape

    # Batch lives on the lane dim; pick a lane tile (multiple of 128) so small
    # batches need exactly one grid step, then pad batch up to a tile multiple.
    b128 = ((B + 127) // 128) * 128
    if tb is None:
        tb = min(512, b128)
    bp = ((B + tb - 1) // tb) * tb

    xT = x.T                                   # [S, B]
    if bp != B:
        xT = jnp.pad(xT, ((0, 0), (0, bp - B)))
    b1c = fc1_b.reshape(H, 1)
    b2c = fc2_b.reshape(A, 1)

    outT = pl.pallas_call(
        reinforce_kernel,
        out_shape=jax.ShapeDtypeStruct((A, bp), jnp.float32),
        grid=(bp // tb,),
        in_specs=[
            pl.BlockSpec((S, tb), lambda i: (0, i)),   # x^T batch tile
            pl.BlockSpec((H, S), lambda i: (0, 0)),    # weights stay resident
            pl.BlockSpec((H, 1), lambda i: (0, 0)),
            pl.BlockSpec((A, H), lambda i: (0, 0)),
            pl.BlockSpec((A, 1), lambda i: (0, 0)),
        ],
        out_specs=pl.BlockSpec((A, tb), lambda i: (0, i)),
        compiler_params=pltpu.CompilerParams(
            dimension_semantics=("parallel",),   # megacore-shard batch on v7x
        ),
    )(xT, fc1_w, b1c, fc2_w, b2c)

    return outT[:, :B].T                        # [B, A]


def _ref_forward(x, fc1_w, fc1_b, fc2_w, fc2_b):
    h = jnp.maximum(x @ fc1_w.T + fc1_b, 0.0)
    logits = h @ fc2_w.T + fc2_b
    return jax.nn.softmax(logits, axis=-1)


if __name__ == "__main__":
    # CartPole-like shapes from the module: n_states=4, n_actions=2, hidden=128.
    # B is a rollout-sized batch, deliberately NOT a multiple of the 128-lane
    # tile so the padding path is exercised.
    B, n_states, hidden, n_actions = 300, 4, 128, 2

    key = jax.random.PRNGKey(0)
    k_x, k_w1, k_b1, k_w2, k_b2 = jax.random.split(key, 5)

    x = jax.random.normal(k_x, (B, n_states), dtype=jnp.float32)

    # Deterministic synthetic parameters (uniform like nn.Linear default init),
    # stored in the PyTorch [out_features, in_features] layout.
    lim1 = 1.0 / (n_states ** 0.5)
    fc1_w = jax.random.uniform(k_w1, (hidden, n_states), jnp.float32, -lim1, lim1)
    fc1_b = jax.random.uniform(k_b1, (hidden,), jnp.float32, -lim1, lim1)
    lim2 = 1.0 / (hidden ** 0.5)
    fc2_w = jax.random.uniform(k_w2, (n_actions, hidden), jnp.float32, -lim2, lim2)
    fc2_b = jax.random.uniform(k_b2, (n_actions,), jnp.float32, -lim2, lim2)

    ref = _ref_forward(x, fc1_w, fc1_b, fc2_w, fc2_b)

    # 1) Default adaptive tile: single grid step (tb = 384 here).
    out = reinforce_forward(x, fc1_w, fc1_b, fc2_w, fc2_b)
    jax.block_until_ready(out)
    assert out.shape == (B, n_actions)
    assert jnp.allclose(out, ref, atol=1e-5, rtol=1e-5)
    assert jnp.allclose(jnp.sum(out, axis=-1), 1.0, atol=1e-5)

    # 2) Forced small tile: exercises the multi-step pipelined grid (3 steps).
    out_tiled = reinforce_forward(x, fc1_w, fc1_b, fc2_w, fc2_b, tb=128)
    jax.block_until_ready(out_tiled)
    assert jnp.allclose(out_tiled, ref, atol=1e-5, rtol=1e-5)

    print("KERNEL_OK")
</pallas_src>

<mosaic_0001>
module attributes {stable_mosaic.version = 11 : i64} {
  func.func @reinforce_kernel(%arg0: i32, %arg1: memref<4x384xf32, #tpu.memory_space<vmem>>, %arg2: memref<128x4xf32, #tpu.memory_space<vmem>>, %arg3: memref<128x1xf32, #tpu.memory_space<vmem>>, %arg4: memref<2x128xf32, #tpu.memory_space<vmem>>, %arg5: memref<2x1xf32, #tpu.memory_space<vmem>>, %arg6: memref<2x384xf32, #tpu.memory_space<vmem>>) attributes {dimension_semantics = [#tpu.dimension_semantics<parallel>], iteration_bounds = array<i64: 1>, scalar_prefetch = 0 : i64, scratch_operands = 0 : i64, tpu.core_type = #tpu.core_type<tc>, window_params = [{transform_indices = @transform_0, window_bounds = array<i64: 4, 384>}, {pipeline_mode = #tpu.pipeline_mode<synchronous>, transform_indices = @transform_1, window_bounds = array<i64: 128, 4>}, {pipeline_mode = #tpu.pipeline_mode<synchronous>, transform_indices = @transform_2, window_bounds = array<i64: 128, 1>}, {pipeline_mode = #tpu.pipeline_mode<synchronous>, transform_indices = @transform_3, window_bounds = array<i64: 2, 128>}, {pipeline_mode = #tpu.pipeline_mode<synchronous>, transform_indices = @transform_4, window_bounds = array<i64: 2, 1>}, {transform_indices = @transform_5, window_bounds = array<i64: 2, 384>}]} {
    %c0 = arith.constant 0 : index
    %c0_0 = arith.constant 0 : index
    %0 = vector.load %arg1[%c0, %c0_0] : memref<4x384xf32, #tpu.memory_space<vmem>>, vector<4x384xf32>
    %c0_1 = arith.constant 0 : index
    %c0_2 = arith.constant 0 : index
    %1 = vector.load %arg2[%c0_1, %c0_2] : memref<128x4xf32, #tpu.memory_space<vmem>>, vector<128x4xf32>
    %c0_3 = arith.constant 0 : index
    %c0_4 = arith.constant 0 : index
    %2 = vector.load %arg3[%c0_3, %c0_4] : memref<128x1xf32, #tpu.memory_space<vmem>>, vector<128x1xf32>
    %3 = vector.extract_strided_slice %1 {offsets = [0, 0], sizes = [128, 1], strides = [1, 1]} : vector<128x4xf32> to vector<128x1xf32>
    %4 = vector.extract_strided_slice %0 {offsets = [0, 0], sizes = [1, 384], strides = [1, 1]} : vector<4x384xf32> to vector<1x384xf32>
    %5 = vector.broadcast %3 : vector<128x1xf32> to vector<128x384xf32>
    %6 = vector.broadcast %4 : vector<1x384xf32> to vector<128x384xf32>
    %7 = arith.mulf %5, %6 : vector<128x384xf32>
    %8 = vector.broadcast %2 : vector<128x1xf32> to vector<128x384xf32>
    %9 = arith.addf %8, %7 : vector<128x384xf32>
    %10 = vector.extract_strided_slice %1 {offsets = [0, 1], sizes = [128, 1], strides = [1, 1]} : vector<128x4xf32> to vector<128x1xf32>
    %11 = vector.extract_strided_slice %0 {offsets = [1, 0], sizes = [1, 384], strides = [1, 1]} : vector<4x384xf32> to vector<1x384xf32>
    %12 = vector.broadcast %10 : vector<128x1xf32> to vector<128x384xf32>
    %13 = vector.broadcast %11 : vector<1x384xf32> to vector<128x384xf32>
    %14 = arith.mulf %12, %13 : vector<128x384xf32>
    %15 = arith.addf %9, %14 : vector<128x384xf32>
    %16 = vector.extract_strided_slice %1 {offsets = [0, 2], sizes = [128, 1], strides = [1, 1]} : vector<128x4xf32> to vector<128x1xf32>
    %17 = vector.extract_strided_slice %0 {offsets = [2, 0], sizes = [1, 384], strides = [1, 1]} : vector<4x384xf32> to vector<1x384xf32>
    %18 = vector.broadcast %16 : vector<128x1xf32> to vector<128x384xf32>
    %19 = vector.broadcast %17 : vector<1x384xf32> to vector<128x384xf32>
    %20 = arith.mulf %18, %19 : vector<128x384xf32>
    %21 = arith.addf %15, %20 : vector<128x384xf32>
    %22 = vector.extract_strided_slice %1 {offsets = [0, 3], sizes = [128, 1], strides = [1, 1]} : vector<128x4xf32> to vector<128x1xf32>
    %23 = vector.extract_strided_slice %0 {offsets = [3, 0], sizes = [1, 384], strides = [1, 1]} : vector<4x384xf32> to vector<1x384xf32>
    %24 = vector.broadcast %22 : vector<128x1xf32> to vector<128x384xf32>
    %25 = vector.broadcast %23 : vector<1x384xf32> to vector<128x384xf32>
    %26 = arith.mulf %24, %25 : vector<128x384xf32>
    %27 = arith.addf %21, %26 : vector<128x384xf32>
    %cst = arith.constant 0.000000e+00 : f32
    %28 = vector.broadcast %cst : f32 to vector<128x384xf32>
    %29 = arith.maximumf %27, %28 : vector<128x384xf32>
    %c0_5 = arith.constant 0 : index
    %c0_6 = arith.constant 0 : index
    %30 = vector.load %arg4[%c0_5, %c0_6] : memref<2x128xf32, #tpu.memory_space<vmem>>, vector<2x128xf32>
    %cst_7 = arith.constant dense<0.000000e+00> : vector<2x384xf32>
    %31 = tpu.matmul %30, %29, %cst_7 {dimension_numbers = #tpu.dot_dimension_numbers<[1], [0], [0], [1], [0, 0, 1, 1], [], []>} : vector<2x128xf32>, vector<128x384xf32>, vector<2x384xf32> -> vector<2x384xf32>
    %c0_8 = arith.constant 0 : index
    %c0_9 = arith.constant 0 : index
    %32 = vector.load %arg5[%c0_8, %c0_9] : memref<2x1xf32, #tpu.memory_space<vmem>>, vector<2x1xf32>
    %33 = vector.broadcast %32 : vector<2x1xf32> to vector<2x384xf32>
    %34 = arith.addf %31, %33 : vector<2x384xf32>
    %cst_10 = arith.constant dense<0xFF800000> : vector<384xf32>
    %35 = vector.multi_reduction <maximumf>, %34, %cst_10 [0] : vector<2x384xf32> to vector<384xf32>
    %36 = vector.shape_cast %35 : vector<384xf32> to vector<1x384xf32>
    %37 = vector.broadcast %36 : vector<1x384xf32> to vector<2x384xf32>
    %38 = arith.subf %34, %37 : vector<2x384xf32>
    %39 = math.exp %38 : vector<2x384xf32>
    %cst_11 = arith.constant dense<0.000000e+00> : vector<384xf32>
    %40 = vector.multi_reduction <add>, %39, %cst_11 [0] : vector<2x384xf32> to vector<384xf32>
    %41 = vector.shape_cast %40 : vector<384xf32> to vector<1x384xf32>
    %42 = tpu.reciprocal %41 : vector<1x384xf32> -> vector<1x384xf32>
    %43 = vector.broadcast %42 : vector<1x384xf32> to vector<2x384xf32>
    %44 = arith.mulf %39, %43 : vector<2x384xf32>
    %c0_12 = arith.constant 0 : index
    %c0_13 = arith.constant 0 : index
    %45 = vector.load %arg6[%c0_12, %c0_13] : memref<2x384xf32, #tpu.memory_space<vmem>>, vector<2x384xf32>
    tpu.vector_store %arg6[%c0_12, %c0_13], %44 {strides = array<i32>} : memref<2x384xf32, #tpu.memory_space<vmem>>, vector<2x384xf32>,
    return
  }
  func.func @transform_0(%arg0: i32) -> (i32, i32) {
    %c0_i32 = arith.constant 0 : i32
    %c0_i32_0 = arith.constant 0 : i32
    return %c0_i32, %arg0 : i32, i32
  }
  func.func @transform_1(%arg0: i32) -> (i32, i32) {
    %c0_i32 = arith.constant 0 : i32
    %c0_i32_0 = arith.constant 0 : i32
    %c0_i32_1 = arith.constant 0 : i32
    return %c0_i32, %c0_i32_0 : i32, i32
  }
  func.func @transform_2(%arg0: i32) -> (i32, i32) {
    %c0_i32 = arith.constant 0 : i32
    %c0_i32_0 = arith.constant 0 : i32
    %c0_i32_1 = arith.constant 0 : i32
    return %c0_i32, %c0_i32_0 : i32, i32
  }
  func.func @transform_3(%arg0: i32) -> (i32, i32) {
    %c0_i32 = arith.constant 0 : i32
    %c0_i32_0 = arith.constant 0 : i32
    %c0_i32_1 = arith.constant 0 : i32
    return %c0_i32, %c0_i32_0 : i32, i32
  }
  func.func @transform_4(%arg0: i32) -> (i32, i32) {
    %c0_i32 = arith.constant 0 : i32
    %c0_i32_0 = arith.constant 0 : i32
    %c0_i32_1 = arith.constant 0 : i32
    return %c0_i32, %c0_i32_0 : i32, i32
  }
  func.func @transform_5(%arg0: i32) -> (i32, i32) {
    %c0_i32 = arith.constant 0 : i32
    %c0_i32_0 = arith.constant 0 : i32
    return %c0_i32, %arg0 : i32, i32
  }
}

</mosaic_0001>

<llo_original>
// kernel: tpu_custom_call.1
$region0: #{tpu_custom_call.1}
  #allocation0 [shape = 'u32[]', space=smem, size = 0x4, offset = 0x4, fixed_abs, tag = 'smem constant byte address 0x4 - core index']
  #allocation1 [shape = 'u32[144,128]{1,0:T(1,128)}', space=vmem, size = 0x12000, scoped, tag = 'internal scratch']
  %s0 = inlined_call_operand.vmem [shape: f32[4,384], index: 0, kind: input, shape index: {}]
  %s1 = inlined_call_operand.vmem [shape: f32[128,4], index: 1, kind: input, shape index: {}]
  %s2 = inlined_call_operand.vmem [shape: f32[128,1], index: 2, kind: input, shape index: {}]
  %s3 = inlined_call_operand.vmem [shape: f32[2,128], index: 3, kind: input, shape index: {}]
  %s4 = inlined_call_operand.vmem [shape: f32[2,1], index: 4, kind: input, shape index: {}]
  %s5 = inlined_call_operand.hbm [shape: f32[2,384], index: 5, kind: output, shape index: {}]
  %s6 = sld [smem:[#allocation0]]
  $region30: #{tpu_custom_call.1} parent=0
    _
  %s8 = ssub.s32 1, %s6
  %s9 = scalar_select 0, %s8, %s6
  $region1: #{tpu_custom_call.1} parent=0
    #allocation2 [shape = 'u8[3072]{0}', space=vmem, size = 0xc00, scoped, tag = 'output window, operand 0, single buffered']
    #allocation3 [shape = 's32[1]{0}', space=sflag, size = 0x4, scoped, tag = 'scoped memory for tpu_custom_call.1']
    %10 = vsyncpa [#allocation3], 0
    // Predicated region
    $region2: #{tpu_custom_call.1} parent=1 // pred_check
      _
    $region3: #{tpu_custom_call.1} parent=1 // pred_check_branch
      %12 = sbr.rel (0) target = $region5
    $region4: #{tpu_custom_call.1} parent=1 // pred_region
      _
    $region5: #{tpu_custom_call.1} parent=1 // pred_fallthru
      _
    // Predicated region
    $region6: #{tpu_custom_call.1} parent=1 // pred_check
      _
    $region7: #{tpu_custom_call.1} parent=1 // pred_check_branch
      %14 = sbr.rel (0) target = $region9
    $region8: #{tpu_custom_call.1} parent=1 // pred_region
      _
    $region9: #{tpu_custom_call.1} parent=1 // pred_fallthru
      _
    // Predicated region
    $region10: #{tpu_custom_call.1} parent=1 // pred_check
      _
    $region11: #{tpu_custom_call.1} parent=1 // pred_check_branch
      %16 = sbr.rel (0) target = $region13
    $region12: #{tpu_custom_call.1} parent=1 // pred_region
      _
    $region13: #{tpu_custom_call.1} parent=1 // pred_fallthru
      _
    // Predicated region
    $region14: #{tpu_custom_call.1} parent=1 // pred_check
      _
    $region15: #{tpu_custom_call.1} parent=1 // pred_check_branch
      %18 = sbr.rel (0) target = $region17
    $region16: #{tpu_custom_call.1} parent=1 // pred_region
      _
    $region17: #{tpu_custom_call.1} parent=1 // pred_fallthru
      _
    // Predicated region
    $region18: #{tpu_custom_call.1} parent=1 // pred_check
      _
    $region19: #{tpu_custom_call.1} parent=1 // pred_check_branch
      %20 = sbr.rel (0) target = $region21
    $region20: #{tpu_custom_call.1} parent=1 // pred_region
      _
    $region21: #{tpu_custom_call.1} parent=1 // pred_fallthru
      _
    %v21 = vld [vmem:[%s0] sm:$0xff]
    %v22 = vld [vmem:[%s0 + $0x8] sm:$0xf]
    %v23 = vld [vmem:[%s1] sm:$0xff]
    %v24 = vld [vmem:[%s1 + $0x8] sm:$0xff]
    %v25 = vld [vmem:[%s1 + $0x10] sm:$0xff]
    %v26 = vld [vmem:[%s1 + $0x18] sm:$0xff]
    %v27 = vld [vmem:[%s1 + $0x20] sm:$0xff]
    %v28 = vld [vmem:[%s1 + $0x28] sm:$0xff]
    %v29 = vld [vmem:[%s1 + $0x30] sm:$0xff]
    %v30 = vld [vmem:[%s1 + $0x38] sm:$0xff]
    %v31 = vld [vmem:[%s1 + $0x40] sm:$0xff]
    %v32 = vld [vmem:[%s1 + $0x48] sm:$0xff]
    %v33 = vld [vmem:[%s1 + $0x50] sm:$0xff]
    %v34 = vld [vmem:[%s1 + $0x58] sm:$0xff]
    %v35 = vld [vmem:[%s1 + $0x60] sm:$0xff]
    %v36 = vld [vmem:[%s1 + $0x68] sm:$0xff]
    %v37 = vld [vmem:[%s1 + $0x70] sm:$0xff]
    %v38 = vld [vmem:[%s1 + $0x78] sm:$0xff]
    %v39 = vld [vmem:[%s2] sm:$0xff]
    %v40 = vld [vmem:[%s2 + $0x8] sm:$0xff]
    %v41 = vld [vmem:[%s2 + $0x10] sm:$0xff]
    %v42 = vld [vmem:[%s2 + $0x18] sm:$0xff]
    %v43 = vld [vmem:[%s2 + $0x20] sm:$0xff]
    %v44 = vld [vmem:[%s2 + $0x28] sm:$0xff]
    %v45 = vld [vmem:[%s2 + $0x30] sm:$0xff]
    %v46 = vld [vmem:[%s2 + $0x38] sm:$0xff]
    %v47 = vld [vmem:[%s2 + $0x40] sm:$0xff]
    %v48 = vld [vmem:[%s2 + $0x48] sm:$0xff]
    %v49 = vld [vmem:[%s2 + $0x50] sm:$0xff]
    %v50 = vld [vmem:[%s2 + $0x58] sm:$0xff]
    %v51 = vld [vmem:[%s2 + $0x60] sm:$0xff]
    %v52 = vld [vmem:[%s2 + $0x68] sm:$0xff]
    %v53 = vld [vmem:[%s2 + $0x70] sm:$0xff]
    %v54 = vld [vmem:[%s2 + $0x78] sm:$0xff]
    %56 = vset.pattern.permute.xlu0 0
    %57 = vperm.xlu0 %56, %v23
    %v58 = vpop.permute.xlu0 %57
    %61 = vset.pattern.permute.xlu0 0
    %62 = vperm.xlu0 %61, %v24
    %v63 = vpop.permute.xlu0 %62
    %66 = vset.pattern.permute.xlu0 0
    %67 = vperm.xlu0 %66, %v25
    %v68 = vpop.permute.xlu0 %67
    %71 = vset.pattern.permute.xlu0 0
    %72 = vperm.xlu0 %71, %v26
    %v73 = vpop.permute.xlu0 %72
    %76 = vset.pattern.permute.xlu0 0
    %77 = vperm.xlu0 %76, %v27
    %v78 = vpop.permute.xlu0 %77
    %81 = vset.pattern.permute.xlu0 0
    %82 = vperm.xlu0 %81, %v28
    %v83 = vpop.permute.xlu0 %82
    %86 = vset.pattern.permute.xlu0 0
    %87 = vperm.xlu0 %86, %v29
    %v88 = vpop.permute.xlu0 %87
    %91 = vset.pattern.permute.xlu0 0
    %92 = vperm.xlu0 %91, %v30
    %v93 = vpop.permute.xlu0 %92
    %96 = vset.pattern.permute.xlu0 0
    %97 = vperm.xlu0 %96, %v31
    %v98 = vpop.permute.xlu0 %97
    %101 = vset.pattern.permute.xlu0 0
    %102 = vperm.xlu0 %101, %v32
    %v103 = vpop.permute.xlu0 %102
    %106 = vset.pattern.permute.xlu0 0
    %107 = vperm.xlu0 %106, %v33
    %v108 = vpop.permute.xlu0 %107
    %111 = vset.pattern.permute.xlu0 0
    %112 = vperm.xlu0 %111, %v34
    %v113 = vpop.permute.xlu0 %112
    %116 = vset.pattern.permute.xlu0 0
    %117 = vperm.xlu0 %116, %v35
    %v118 = vpop.permute.xlu0 %117
    %121 = vset.pattern.permute.xlu0 0
    %122 = vperm.xlu0 %121, %v36
    %v123 = vpop.permute.xlu0 %122
    %126 = vset.pattern.permute.xlu0 0
    %127 = vperm.xlu0 %126, %v37
    %v128 = vpop.permute.xlu0 %127
    %131 = vset.pattern.permute.xlu0 0
    %132 = vperm.xlu0 %131, %v38
    %v133 = vpop.permute.xlu0 %132
    %v137 = vlaneseq
    %v138 = vshrl.u32 %v137, 7
    %v139 = vsub.s32 0, %v138
    %v140 = vrot.slane %v21, %v139
    %v141 = vlaneseq
    %v142 = vshrl.u32 %v141, 7
    %v143 = vsub.s32 4, %v142
    %v144 = vrot.slane %v21, %v143
    %v145 = vlaneseq
    %v146 = vshrl.u32 %v145, 7
    %v147 = vsub.s32 0, %v146
    %v148 = vrot.slane %v22, %v147
    %v152 = vlaneseq
    %v153 = vshrl.u32 %v152, 7
    %v154 = vsub.s32 0, %v153
    %v155 = vrot.slane %v140, %v154
    %v156 = vlaneseq
    %v157 = vshrl.u32 %v156, 7
    %v158 = vsub.s32 0, %v157
    %v159 = vrot.slane %v144, %v158
    %v160 = vlaneseq
    %v161 = vshrl.u32 %v160, 7
    %v162 = vsub.s32 0, %v161
    %v163 = vrot.slane %v148, %v162
    %v164 = vmul.f32 %v58, %v155
    %v165 = vmul.f32 %v58, %v159
    %v166 = vmul.f32 %v58, %v163
    %v167 = vmul.f32 %v63, %v155
    %v168 = vmul.f32 %v63, %v159
    %v169 = vmul.f32 %v63, %v163
    %v170 = vmul.f32 %v68, %v155
    %v171 = vmul.f32 %v68, %v159
    %v172 = vmul.f32 %v68, %v163
    %v173 = vmul.f32 %v73, %v155
    %v174 = vmul.f32 %v73, %v159
    %v175 = vmul.f32 %v73, %v163
    %v176 = vmul.f32 %v78, %v155
    %v177 = vmul.f32 %v78, %v159
    %v178 = vmul.f32 %v78, %v163
    %v179 = vmul.f32 %v83, %v155
    %v180 = vmul.f32 %v83, %v159
    %v181 = vmul.f32 %v83, %v163
    %v182 = vmul.f32 %v88, %v155
    %v183 = vmul.f32 %v88, %v159
    %v184 = vmul.f32 %v88, %v163
    %v185 = vmul.f32 %v93, %v155
    %v186 = vmul.f32 %v93, %v159
    %v187 = vmul.f32 %v93, %v163
    %v188 = vmul.f32 %v98, %v155
    %v189 = vmul.f32 %v98, %v159
    %v190 = vmul.f32 %v98, %v163
    %v191 = vmul.f32 %v103, %v155
    %v192 = vmul.f32 %v103, %v159
    %v193 = vmul.f32 %v103, %v163
    %v194 = vmul.f32 %v108, %v155
    %v195 = vmul.f32 %v108, %v159
    %v196 = vmul.f32 %v108, %v163
    %v197 = vmul.f32 %v113, %v155
    %v198 = vmul.f32 %v113, %v159
    %v199 = vmul.f32 %v113, %v163
    %v200 = vmul.f32 %v118, %v155
    %v201 = vmul.f32 %v118, %v159
    %v202 = vmul.f32 %v118, %v163
    %v203 = vmul.f32 %v123, %v155
    %v204 = vmul.f32 %v123, %v159
    %v205 = vmul.f32 %v123, %v163
    %v206 = vmul.f32 %v128, %v155
    %v207 = vmul.f32 %v128, %v159
    %v208 = vmul.f32 %v128, %v163
    %v209 = vmul.f32 %v133, %v155
    %v210 = vmul.f32 %v133, %v159
    %v211 = vmul.f32 %v133, %v163
    %213 = vset.pattern.permute.xlu0 0
    %214 = vperm.xlu0 %213, %v39
    %v215 = vpop.permute.xlu0 %214
    %218 = vset.pattern.permute.xlu0 0
    %219 = vperm.xlu0 %218, %v40
    %v220 = vpop.permute.xlu0 %219
    %223 = vset.pattern.permute.xlu0 0
    %224 = vperm.xlu0 %223, %v41
    %v225 = vpop.permute.xlu0 %224
    %228 = vset.pattern.permute.xlu0 0
    %229 = vperm.xlu0 %228, %v42
    %v230 = vpop.permute.xlu0 %229
    %233 = vset.pattern.permute.xlu0 0
    %234 = vperm.xlu0 %233, %v43
    %v235 = vpop.permute.xlu0 %234
    %238 = vset.pattern.permute.xlu0 0
    %239 = vperm.xlu0 %238, %v44
    %v240 = vpop.permute.xlu0 %239
    %243 = vset.pattern.permute.xlu0 0
    %244 = vperm.xlu0 %243, %v45
    %v245 = vpop.permute.xlu0 %244
    %248 = vset.pattern.permute.xlu0 0
    %249 = vperm.xlu0 %248, %v46
    %v250 = vpop.permute.xlu0 %249
    %253 = vset.pattern.permute.xlu0 0
    %254 = vperm.xlu0 %253, %v47
    %v255 = vpop.permute.xlu0 %254
    %258 = vset.pattern.permute.xlu0 0
    %259 = vperm.xlu0 %258, %v48
    %v260 = vpop.permute.xlu0 %259
    %263 = vset.pattern.permute.xlu0 0
    %264 = vperm.xlu0 %263, %v49
    %v265 = vpop.permute.xlu0 %264
    %268 = vset.pattern.permute.xlu0 0
    %269 = vperm.xlu0 %268, %v50
    %v270 = vpop.permute.xlu0 %269
    %273 = vset.pattern.permute.xlu0 0
    %274 = vperm.xlu0 %273, %v51
    %v275 = vpop.permute.xlu0 %274
    %278 = vset.pattern.permute.xlu0 0
    %279 = vperm.xlu0 %278, %v52
    %v280 = vpop.permute.xlu0 %279
    %283 = vset.pattern.permute.xlu0 0
    %284 = vperm.xlu0 %283, %v53
    %v285 = vpop.permute.xlu0 %284
    %288 = vset.pattern.permute.xlu0 0
    %289 = vperm.xlu0 %288, %v54
    %v290 = vpop.permute.xlu0 %289
    %v292 = vadd.f32 %v215, %v164
    %v293 = vadd.f32 %v215, %v165
    %v294 = vadd.f32 %v215, %v166
    %v295 = vadd.f32 %v220, %v167
    %v296 = vadd.f32 %v220, %v168
    %v297 = vadd.f32 %v220, %v169
    %v298 = vadd.f32 %v225, %v170
    %v299 = vadd.f32 %v225, %v171
    %v300 = vadd.f32 %v225, %v172
    %v301 = vadd.f32 %v230, %v173
    %v302 = vadd.f32 %v230, %v174
    %v303 = vadd.f32 %v230, %v175
    %v304 = vadd.f32 %v235, %v176
    %v305 = vadd.f32 %v235, %v177
    %v306 = vadd.f32 %v235, %v178
    %v307 = vadd.f32 %v240, %v179
    %v308 = vadd.f32 %v240, %v180
    %v309 = vadd.f32 %v240, %v181
    %v310 = vadd.f32 %v245, %v182
    %v311 = vadd.f32 %v245, %v183
    %v312 = vadd.f32 %v245, %v184
    %v313 = vadd.f32 %v250, %v185
    %v314 = vadd.f32 %v250, %v186
    %v315 = vadd.f32 %v250, %v187
    %v316 = vadd.f32 %v255, %v188
    %v317 = vadd.f32 %v255, %v189
    %v318 = vadd.f32 %v255, %v190
    %v319 = vadd.f32 %v260, %v191
    %v320 = vadd.f32 %v260, %v192
    %v321 = vadd.f32 %v260, %v193
    %v322 = vadd.f32 %v265, %v194
    %v323 = vadd.f32 %v265, %v195
    %v324 = vadd.f32 %v265, %v196
    %v325 = vadd.f32 %v270, %v197
    %v326 = vadd.f32 %v270, %v198
    %v327 = vadd.f32 %v270, %v199
    %v328 = vadd.f32 %v275, %v200
    %v329 = vadd.f32 %v275, %v201
    %v330 = vadd.f32 %v275, %v202
    %v331 = vadd.f32 %v280, %v203
    %v332 = vadd.f32 %v280, %v204
    %v333 = vadd.f32 %v280, %v205
    %v334 = vadd.f32 %v285, %v206
    %v335 = vadd.f32 %v285, %v207
    %v336 = vadd.f32 %v285, %v208
    %v337 = vadd.f32 %v290, %v209
    %v338 = vadd.f32 %v290, %v210
    %v339 = vadd.f32 %v290, %v211
    %340 = vset.pattern.permute.xlu0 1
    %341 = vperm.xlu0 %340, %v23
    %v342 = vpop.permute.xlu0 %341
    %344 = vset.pattern.permute.xlu0 1
    %345 = vperm.xlu0 %344, %v24
    %v346 = vpop.permute.xlu0 %345
    %348 = vset.pattern.permute.xlu0 1
    %349 = vperm.xlu0 %348, %v25
    %v350 = vpop.permute.xlu0 %349
    %352 = vset.pattern.permute.xlu0 1
    %353 = vperm.xlu0 %352, %v26
    %v354 = vpop.permute.xlu0 %353
    %356 = vset.pattern.permute.xlu0 1
    %357 = vperm.xlu0 %356, %v27
    %v358 = vpop.permute.xlu0 %357
    %360 = vset.pattern.permute.xlu0 1
    %361 = vperm.xlu0 %360, %v28
    %v362 = vpop.permute.xlu0 %361
    %364 = vset.pattern.permute.xlu0 1
    %365 = vperm.xlu0 %364, %v29
    %v366 = vpop.permute.xlu0 %365
    %368 = vset.pattern.permute.xlu0 1
    %369 = vperm.xlu0 %368, %v30
    %v370 = vpop.permute.xlu0 %369
    %372 = vset.pattern.permute.xlu0 1
    %373 = vperm.xlu0 %372, %v31
    %v374 = vpop.permute.xlu0 %373
    %376 = vset.pattern.permute.xlu0 1
    %377 = vperm.xlu0 %376, %v32
    %v378 = vpop.permute.xlu0 %377
    %380 = vset.pattern.permute.xlu0 1
    %381 = vperm.xlu0 %380, %v33
    %v382 = vpop.permute.xlu0 %381
    %384 = vset.pattern.permute.xlu0 1
    %385 = vperm.xlu0 %384, %v34
    %v386 = vpop.permute.xlu0 %385
    %388 = vset.pattern.permute.xlu0 1
    %389 = vperm.xlu0 %388, %v35
    %v390 = vpop.permute.xlu0 %389
    %392 = vset.pattern.permute.xlu0 1
    %393 = vperm.xlu0 %392, %v36
    %v394 = vpop.permute.xlu0 %393
    %396 = vset.pattern.permute.xlu0 1
    %397 = vperm.xlu0 %396, %v37
    %v398 = vpop.permute.xlu0 %397
    %400 = vset.pattern.permute.xlu0 1
    %401 = vperm.xlu0 %400, %v38
    %v402 = vpop.permute.xlu0 %401
    %v404 = vlaneseq
    %v405 = vshrl.u32 %v404, 7
    %v406 = vsub.s32 1, %v405
    %v407 = vrot.slane %v21, %v406
    %v408 = vlaneseq
    %v409 = vshrl.u32 %v408, 7
    %v410 = vsub.s32 5, %v409
    %v411 = vrot.slane %v21, %v410
    %v412 = vlaneseq
    %v413 = vshrl.u32 %v412, 7
    %v414 = vsub.s32 1, %v413
    %v415 = vrot.slane %v22, %v414
    %v419 = vlaneseq
    %v420 = vshrl.u32 %v419, 7
    %v421 = vsub.s32 1, %v420
    %v422 = vrot.slane %v407, %v421
    %v423 = vlaneseq
    %v424 = vshrl.u32 %v423, 7
    %v425 = vsub.s32 1, %v424
    %v426 = vrot.slane %v411, %v425
    %v427 = vlaneseq
    %v428 = vshrl.u32 %v427, 7
    %v429 = vsub.s32 1, %v428
    %v430 = vrot.slane %v415, %v429
    %v431 = vmul.f32 %v342, %v422
    %v432 = vmul.f32 %v342, %v426
    %v433 = vmul.f32 %v342, %v430
    %v434 = vmul.f32 %v346, %v422
    %v435 = vmul.f32 %v346, %v426
    %v436 = vmul.f32 %v346, %v430
    %v437 = vmul.f32 %v350, %v422
    %v438 = vmul.f32 %v350, %v426
    %v439 = vmul.f32 %v350, %v430
    %v440 = vmul.f32 %v354, %v422
    %v441 = vmul.f32 %v354, %v426
    %v442 = vmul.f32 %v354, %v430
    %v443 = vmul.f32 %v358, %v422
    %v444 = vmul.f32 %v358, %v426
    %v445 = vmul.f32 %v358, %v430
    %v446 = vmul.f32 %v362, %v422
    %v447 = vmul.f32 %v362, %v426
    %v448 = vmul.f32 %v362, %v430
    %v449 = vmul.f32 %v366, %v422
    %v450 = vmul.f32 %v366, %v426
    %v451 = vmul.f32 %v366, %v430
    %v452 = vmul.f32 %v370, %v422
    %v453 = vmul.f32 %v370, %v426
    %v454 = vmul.f32 %v370, %v430
    %v455 = vmul.f32 %v374, %v422
    %v456 = vmul.f32 %v374, %v426
    %v457 = vmul.f32 %v374, %v430
    %v458 = vmul.f32 %v378, %v422
    %v459 = vmul.f32 %v378, %v426
    %v460 = vmul.f32 %v378, %v430
    %v461 = vmul.f32 %v382, %v422
    %v462 = vmul.f32 %v382, %v426
    %v463 = vmul.f32 %v382, %v430
    %v464 = vmul.f32 %v386, %v422
    %v465 = vmul.f32 %v386, %v426
    %v466 = vmul.f32 %v386, %v430
    %v467 = vmul.f32 %v390, %v422
    %v468 = vmul.f32 %v390, %v426
    %v469 = vmul.f32 %v390, %v430
    %v470 = vmul.f32 %v394, %v422
    %v471 = vmul.f32 %v394, %v426
    %v472 = vmul.f32 %v394, %v430
    %v473 = vmul.f32 %v398, %v422
    %v474 = vmul.f32 %v398, %v426
    %v475 = vmul.f32 %v398, %v430
    %v476 = vmul.f32 %v402, %v422
    %v477 = vmul.f32 %v402, %v426
    %v478 = vmul.f32 %v402, %v430
    %v479 = vadd.f32 %v292, %v431
    %v480 = vadd.f32 %v293, %v432
    %v481 = vadd.f32 %v294, %v433
    %v482 = vadd.f32 %v295, %v434
    %v483 = vadd.f32 %v296, %v435
    %v484 = vadd.f32 %v297, %v436
    %v485 = vadd.f32 %v298, %v437
    %v486 = vadd.f32 %v299, %v438
    %v487 = vadd.f32 %v300, %v439
    %v488 = vadd.f32 %v301, %v440
    %v489 = vadd.f32 %v302, %v441
    %v490 = vadd.f32 %v303, %v442
    %v491 = vadd.f32 %v304, %v443
    %v492 = vadd.f32 %v305, %v444
    %v493 = vadd.f32 %v306, %v445
    %v494 = vadd.f32 %v307, %v446
    %v495 = vadd.f32 %v308, %v447
    %v496 = vadd.f32 %v309, %v448
    %v497 = vadd.f32 %v310, %v449
    %v498 = vadd.f32 %v311, %v450
    %v499 = vadd.f32 %v312, %v451
    %v500 = vadd.f32 %v313, %v452
    %v501 = vadd.f32 %v314, %v453
    %v502 = vadd.f32 %v315, %v454
    %v503 = vadd.f32 %v316, %v455
    %v504 = vadd.f32 %v317, %v456
    %v505 = vadd.f32 %v318, %v457
    %v506 = vadd.f32 %v319, %v458
    %v507 = vadd.f32 %v320, %v459
    %v508 = vadd.f32 %v321, %v460
    %v509 = vadd.f32 %v322, %v461
    %v510 = vadd.f32 %v323, %v462
    %v511 = vadd.f32 %v324, %v463
    %v512 = vadd.f32 %v325, %v464
    %v513 = vadd.f32 %v326, %v465
    %v514 = vadd.f32 %v327, %v466
    %v515 = vadd.f32 %v328, %v467
    %v516 = vadd.f32 %v329, %v468
    %v517 = vadd.f32 %v330, %v469
    %v518 = vadd.f32 %v331, %v470
    %v519 = vadd.f32 %v332, %v471
    %v520 = vadd.f32 %v333, %v472
    %v521 = vadd.f32 %v334, %v473
    %v522 = vadd.f32 %v335, %v474
    %v523 = vadd.f32 %v336, %v475
    %v524 = vadd.f32 %v337, %v476
    %v525 = vadd.f32 %v338, %v477
    %v526 = vadd.f32 %v339, %v478
    %527 = vset.pattern.permute.xlu0 2
    %528 = vperm.xlu0 %527, %v23
    %v529 = vpop.permute.xlu0 %528
    %531 = vset.pattern.permute.xlu0 2
    %532 = vperm.xlu0 %531, %v24
    %v533 = vpop.permute.xlu0 %532
    %535 = vset.pattern.permute.xlu0 2
    %536 = vperm.xlu0 %535, %v25
    %v537 = vpop.permute.xlu0 %536
    %539 = vset.pattern.permute.xlu0 2
    %540 = vperm.xlu0 %539, %v26
    %v541 = vpop.permute.xlu0 %540
    %543 = vset.pattern.permute.xlu0 2
    %544 = vperm.xlu0 %543, %v27
    %v545 = vpop.permute.xlu0 %544
    %547 = vset.pattern.permute.xlu0 2
    %548 = vperm.xlu0 %547, %v28
    %v549 = vpop.permute.xlu0 %548
    %551 = vset.pattern.permute.xlu0 2
    %552 = vperm.xlu0 %551, %v29
    %v553 = vpop.permute.xlu0 %552
    %555 = vset.pattern.permute.xlu0 2
    %556 = vperm.xlu0 %555, %v30
    %v557 = vpop.permute.xlu0 %556
    %559 = vset.pattern.permute.xlu0 2
    %560 = vperm.xlu0 %559, %v31
    %v561 = vpop.permute.xlu0 %560
    %563 = vset.pattern.permute.xlu0 2
    %564 = vperm.xlu0 %563, %v32
    %v565 = vpop.permute.xlu0 %564
    %567 = vset.pattern.permute.xlu0 2
    %568 = vperm.xlu0 %567, %v33
    %v569 = vpop.permute.xlu0 %568
    %571 = vset.pattern.permute.xlu0 2
    %572 = vperm.xlu0 %571, %v34
    %v573 = vpop.permute.xlu0 %572
    %575 = vset.pattern.permute.xlu0 2
    %576 = vperm.xlu0 %575, %v35
    %v577 = vpop.permute.xlu0 %576
    %579 = vset.pattern.permute.xlu0 2
    %580 = vperm.xlu0 %579, %v36
    %v581 = vpop.permute.xlu0 %580
    %583 = vset.pattern.permute.xlu0 2
    %584 = vperm.xlu0 %583, %v37
    %v585 = vpop.permute.xlu0 %584
    %587 = vset.pattern.permute.xlu0 2
    %588 = vperm.xlu0 %587, %v38
    %v589 = vpop.permute.xlu0 %588
    %v591 = vlaneseq
    %v592 = vshrl.u32 %v591, 7
    %v593 = vsub.s32 2, %v592
    %v594 = vrot.slane %v21, %v593
    %v595 = vlaneseq
    %v596 = vshrl.u32 %v595, 7
    %v597 = vsub.s32 6, %v596
    %v598 = vrot.slane %v21, %v597
    %v599 = vlaneseq
    %v600 = vshrl.u32 %v599, 7
    %v601 = vsub.s32 2, %v600
    %v602 = vrot.slane %v22, %v601
    %v606 = vlaneseq
    %v607 = vshrl.u32 %v606, 7
    %v608 = vsub.s32 2, %v607
    %v609 = vrot.slane %v594, %v608
    %v610 = vlaneseq
    %v611 = vshrl.u32 %v610, 7
    %v612 = vsub.s32 2, %v611
    %v613 = vrot.slane %v598, %v612
    %v614 = vlaneseq
    %v615 = vshrl.u32 %v614, 7
    %v616 = vsub.s32 2, %v615
    %v617 = vrot.slane %v602, %v616
    %v618 = vmul.f32 %v529, %v609
    %v619 = vmul.f32 %v529, %v613
    %v620 = vmul.f32 %v529, %v617
    %v621 = vmul.f32 %v533, %v609
    %v622 = vmul.f32 %v533, %v613
    %v623 = vmul.f32 %v533, %v617
    %v624 = vmul.f32 %v537, %v609
    %v625 = vmul.f32 %v537, %v613
    %v626 = vmul.f32 %v537, %v617
    %v627 = vmul.f32 %v541, %v609
    %v628 = vmul.f32 %v541, %v613
    %v629 = vmul.f32 %v541, %v617
    %v630 = vmul.f32 %v545, %v609
    %v631 = vmul.f32 %v545, %v613
    %v632 = vmul.f32 %v545, %v617
    %v633 = vmul.f32 %v549, %v609
    %v634 = vmul.f32 %v549, %v613
    %v635 = vmul.f32 %v549, %v617
    %v636 = vmul.f32 %v553, %v609
    %v637 = vmul.f32 %v553, %v613
    %v638 = vmul.f32 %v553, %v617
    %v639 = vmul.f32 %v557, %v609
    %v640 = vmul.f32 %v557, %v613
    %v641 = vmul.f32 %v557, %v617
    %v642 = vmul.f32 %v561, %v609
    %v643 = vmul.f32 %v561, %v613
    %v644 = vmul.f32 %v561, %v617
    %v645 = vmul.f32 %v565, %v609
    %v646 = vmul.f32 %v565, %v613
    %v647 = vmul.f32 %v565, %v617
    %v648 = vmul.f32 %v569, %v609
    %v649 = vmul.f32 %v569, %v613
    %v650 = vmul.f32 %v569, %v617
    %v651 = vmul.f32 %v573, %v609
    %v652 = vmul.f32 %v573, %v613
    %v653 = vmul.f32 %v573, %v617
    %v654 = vmul.f32 %v577, %v609
    %v655 = vmul.f32 %v577, %v613
    %v656 = vmul.f32 %v577, %v617
    %v657 = vmul.f32 %v581, %v609
    %v658 = vmul.f32 %v581, %v613
    %v659 = vmul.f32 %v581, %v617
    %v660 = vmul.f32 %v585, %v609
    %v661 = vmul.f32 %v585, %v613
    %v662 = vmul.f32 %v585, %v617
    %v663 = vmul.f32 %v589, %v609
    %v664 = vmul.f32 %v589, %v613
    %v665 = vmul.f32 %v589, %v617
    %v666 = vadd.f32 %v479, %v618
    %v667 = vadd.f32 %v480, %v619
    %v668 = vadd.f32 %v481, %v620
    %v669 = vadd.f32 %v482, %v621
    %v670 = vadd.f32 %v483, %v622
    %v671 = vadd.f32 %v484, %v623
    %v672 = vadd.f32 %v485, %v624
    %v673 = vadd.f32 %v486, %v625
    %v674 = vadd.f32 %v487, %v626
    %v675 = vadd.f32 %v488, %v627
    %v676 = vadd.f32 %v489, %v628
    %v677 = vadd.f32 %v490, %v629
    %v678 = vadd.f32 %v491, %v630
    %v679 = vadd.f32 %v492, %v631
    %v680 = vadd.f32 %v493, %v632
    %v681 = vadd.f32 %v494, %v633
    %v682 = vadd.f32 %v495, %v634
    %v683 = vadd.f32 %v496, %v635
    %v684 = vadd.f32 %v497, %v636
    %v685 = vadd.f32 %v498, %v637
    %v686 = vadd.f32 %v499, %v638
    %v687 = vadd.f32 %v500, %v639
    %v688 = vadd.f32 %v501, %v640
    %v689 = vadd.f32 %v502, %v641
    %v690 = vadd.f32 %v503, %v642
    %v691 = vadd.f32 %v504, %v643
    %v692 = vadd.f32 %v505, %v644
    %v693 = vadd.f32 %v506, %v645
    %v694 = vadd.f32 %v507, %v646
    %v695 = vadd.f32 %v508, %v647
    %v696 = vadd.f32 %v509, %v648
    %v697 = vadd.f32 %v510, %v649
    %v698 = vadd.f32 %v511, %v650
    %v699 = vadd.f32 %v512, %v651
    %v700 = vadd.f32 %v513, %v652
    %v701 = vadd.f32 %v514, %v653
    %v702 = vadd.f32 %v515, %v654
    %v703 = vadd.f32 %v516, %v655
    %v704 = vadd.f32 %v517, %v656
    %v705 = vadd.f32 %v518, %v657
    %v706 = vadd.f32 %v519, %v658
    %v707 = vadd.f32 %v520, %v659
    %v708 = vadd.f32 %v521, %v660
    %v709 = vadd.f32 %v522, %v661
    %v710 = vadd.f32 %v523, %v662
    %v711 = vadd.f32 %v524, %v663
    %v712 = vadd.f32 %v525, %v664
    %v713 = vadd.f32 %v526, %v665
    %714 = vset.pattern.permute.xlu0 3
    %715 = vperm.xlu0 %714, %v23
    %v716 = vpop.permute.xlu0 %715
    %718 = vset.pattern.permute.xlu0 3
    %719 = vperm.xlu0 %718, %v24
    %v720 = vpop.permute.xlu0 %719
    %722 = vset.pattern.permute.xlu0 3
    %723 = vperm.xlu0 %722, %v25
    %v724 = vpop.permute.xlu0 %723
    %726 = vset.pattern.permute.xlu0 3
    %727 = vperm.xlu0 %726, %v26
    %v728 = vpop.permute.xlu0 %727
    %730 = vset.pattern.permute.xlu0 3
    %731 = vperm.xlu0 %730, %v27
    %v732 = vpop.permute.xlu0 %731
    %734 = vset.pattern.permute.xlu0 3
    %735 = vperm.xlu0 %734, %v28
    %v736 = vpop.permute.xlu0 %735
    %738 = vset.pattern.permute.xlu0 3
    %739 = vperm.xlu0 %738, %v29
    %v740 = vpop.permute.xlu0 %739
    %742 = vset.pattern.permute.xlu0 3
    %743 = vperm.xlu0 %742, %v30
    %v744 = vpop.permute.xlu0 %743
    %746 = vset.pattern.permute.xlu0 3
    %747 = vperm.xlu0 %746, %v31
    %v748 = vpop.permute.xlu0 %747
    %750 = vset.pattern.permute.xlu0 3
    %751 = vperm.xlu0 %750, %v32
    %v752 = vpop.permute.xlu0 %751
    %754 = vset.pattern.permute.xlu0 3
    %755 = vperm.xlu0 %754, %v33
    %v756 = vpop.permute.xlu0 %755
    %758 = vset.pattern.permute.xlu0 3
    %759 = vperm.xlu0 %758, %v34
    %v760 = vpop.permute.xlu0 %759
    %762 = vset.pattern.permute.xlu0 3
    %763 = vperm.xlu0 %762, %v35
    %v764 = vpop.permute.xlu0 %763
    %766 = vset.pattern.permute.xlu0 3
    %767 = vperm.xlu0 %766, %v36
    %v768 = vpop.permute.xlu0 %767
    %770 = vset.pattern.permute.xlu0 3
    %771 = vperm.xlu0 %770, %v37
    %v772 = vpop.permute.xlu0 %771
    %774 = vset.pattern.permute.xlu0 3
    %775 = vperm.xlu0 %774, %v38
    %v776 = vpop.permute.xlu0 %775
    %v778 = vlaneseq
    %v779 = vshrl.u32 %v778, 7
    %v780 = vsub.s32 3, %v779
    %v781 = vrot.slane %v21, %v780
    %v782 = vlaneseq
    %v783 = vshrl.u32 %v782, 7
    %v784 = vsub.s32 7, %v783
    %v785 = vrot.slane %v21, %v784
    %v786 = vlaneseq
    %v787 = vshrl.u32 %v786, 7
    %v788 = vsub.s32 3, %v787
    %v789 = vrot.slane %v22, %v788
    %v793 = vlaneseq
    %v794 = vshrl.u32 %v793, 7
    %v795 = vsub.s32 3, %v794
    %v796 = vrot.slane %v781, %v795
    %v797 = vlaneseq
    %v798 = vshrl.u32 %v797, 7
    %v799 = vsub.s32 3, %v798
    %v800 = vrot.slane %v785, %v799
    %v801 = vlaneseq
    %v802 = vshrl.u32 %v801, 7
    %v803 = vsub.s32 3, %v802
    %v804 = vrot.slane %v789, %v803
    %v805 = vmul.f32 %v716, %v796
    %v806 = vmul.f32 %v716, %v800
    %v807 = vmul.f32 %v716, %v804
    %v808 = vmul.f32 %v720, %v796
    %v809 = vmul.f32 %v720, %v800
    %v810 = vmul.f32 %v720, %v804
    %v811 = vmul.f32 %v724, %v796
    %v812 = vmul.f32 %v724, %v800
    %v813 = vmul.f32 %v724, %v804
    %v814 = vmul.f32 %v728, %v796
    %v815 = vmul.f32 %v728, %v800
    %v816 = vmul.f32 %v728, %v804
    %v817 = vmul.f32 %v732, %v796
    %v818 = vmul.f32 %v732, %v800
    %v819 = vmul.f32 %v732, %v804
    %v820 = vmul.f32 %v736, %v796
    %v821 = vmul.f32 %v736, %v800
    %v822 = vmul.f32 %v736, %v804
    %v823 = vmul.f32 %v740, %v796
    %v824 = vmul.f32 %v740, %v800
    %v825 = vmul.f32 %v740, %v804
    %v826 = vmul.f32 %v744, %v796
    %v827 = vmul.f32 %v744, %v800
    %v828 = vmul.f32 %v744, %v804
    %v829 = vmul.f32 %v748, %v796
    %v830 = vmul.f32 %v748, %v800
    %v831 = vmul.f32 %v748, %v804
    %v832 = vmul.f32 %v752, %v796
    %v833 = vmul.f32 %v752, %v800
    %v834 = vmul.f32 %v752, %v804
    %v835 = vmul.f32 %v756, %v796
    %v836 = vmul.f32 %v756, %v800
    %v837 = vmul.f32 %v756, %v804
    %v838 = vmul.f32 %v760, %v796
    %v839 = vmul.f32 %v760, %v800
    %v840 = vmul.f32 %v760, %v804
    %v841 = vmul.f32 %v764, %v796
    %v842 = vmul.f32 %v764, %v800
    %v843 = vmul.f32 %v764, %v804
    %v844 = vmul.f32 %v768, %v796
    %v845 = vmul.f32 %v768, %v800
    %v846 = vmul.f32 %v768, %v804
    %v847 = vmul.f32 %v772, %v796
    %v848 = vmul.f32 %v772, %v800
    %v849 = vmul.f32 %v772, %v804
    %v850 = vmul.f32 %v776, %v796
    %v851 = vmul.f32 %v776, %v800
    %v852 = vmul.f32 %v776, %v804
    %v853 = vadd.f32 %v666, %v805
    %v854 = vadd.f32 %v667, %v806
    %v855 = vadd.f32 %v668, %v807
    %v856 = vadd.f32 %v669, %v808
    %v857 = vadd.f32 %v670, %v809
    %v858 = vadd.f32 %v671, %v810
    %v859 = vadd.f32 %v672, %v811
    %v860 = vadd.f32 %v673, %v812
    %v861 = vadd.f32 %v674, %v813
    %v862 = vadd.f32 %v675, %v814
    %v863 = vadd.f32 %v676, %v815
    %v864 = vadd.f32 %v677, %v816
    %v865 = vadd.f32 %v678, %v817
    %v866 = vadd.f32 %v679, %v818
    %v867 = vadd.f32 %v680, %v819
    %v868 = vadd.f32 %v681, %v820
    %v869 = vadd.f32 %v682, %v821
    %v870 = vadd.f32 %v683, %v822
    %v871 = vadd.f32 %v684, %v823
    %v872 = vadd.f32 %v685, %v824
    %v873 = vadd.f32 %v686, %v825
    %v874 = vadd.f32 %v687, %v826
    %v875 = vadd.f32 %v688, %v827
    %v876 = vadd.f32 %v689, %v828
    %v877 = vadd.f32 %v690, %v829
    %v878 = vadd.f32 %v691, %v830
    %v879 = vadd.f32 %v692, %v831
    %v880 = vadd.f32 %v693, %v832
    %v881 = vadd.f32 %v694, %v833
    %v882 = vadd.f32 %v695, %v834
    %v883 = vadd.f32 %v696, %v835
    %v884 = vadd.f32 %v697, %v836
    %v885 = vadd.f32 %v698, %v837
    %v886 = vadd.f32 %v699, %v838
    %v887 = vadd.f32 %v700, %v839
    %v888 = vadd.f32 %v701, %v840
    %v889 = vadd.f32 %v702, %v841
    %v890 = vadd.f32 %v703, %v842
    %v891 = vadd.f32 %v704, %v843
    %v892 = vadd.f32 %v705, %v844
    %v893 = vadd.f32 %v706, %v845
    %v894 = vadd.f32 %v707, %v846
    %v895 = vadd.f32 %v708, %v847
    %v896 = vadd.f32 %v709, %v848
    %v897 = vadd.f32 %v710, %v849
    %v898 = vadd.f32 %v711, %v850
    %v899 = vadd.f32 %v712, %v851
    %v900 = vadd.f32 %v713, %v852
    %v901 = vmax.f32 %v853, 0.0
    %v902 = vmax.f32 %v854, 0.0
    %v903 = vmax.f32 %v855, 0.0
    %v904 = vmax.f32 %v856, 0.0
    %v905 = vmax.f32 %v857, 0.0
    %v906 = vmax.f32 %v858, 0.0
    %v907 = vmax.f32 %v859, 0.0
    %v908 = vmax.f32 %v860, 0.0
    %v909 = vmax.f32 %v861, 0.0
    %v910 = vmax.f32 %v862, 0.0
    %v911 = vmax.f32 %v863, 0.0
    %v912 = vmax.f32 %v864, 0.0
    %v913 = vmax.f32 %v865, 0.0
    %v914 = vmax.f32 %v866, 0.0
    %v915 = vmax.f32 %v867, 0.0
    %v916 = vmax.f32 %v868, 0.0
    %v917 = vmax.f32 %v869, 0.0
    %v918 = vmax.f32 %v870, 0.0
    %v919 = vmax.f32 %v871, 0.0
    %v920 = vmax.f32 %v872, 0.0
    %v921 = vmax.f32 %v873, 0.0
    %v922 = vmax.f32 %v874, 0.0
    %v923 = vmax.f32 %v875, 0.0
    %v924 = vmax.f32 %v876, 0.0
    %v925 = vmax.f32 %v877, 0.0
    %v926 = vmax.f32 %v878, 0.0
    %v927 = vmax.f32 %v879, 0.0
    %v928 = vmax.f32 %v880, 0.0
    %v929 = vmax.f32 %v881, 0.0
    %v930 = vmax.f32 %v882, 0.0
    %v931 = vmax.f32 %v883, 0.0
    %v932 = vmax.f32 %v884, 0.0
    %v933 = vmax.f32 %v885, 0.0
    %v934 = vmax.f32 %v886, 0.0
    %v935 = vmax.f32 %v887, 0.0
    %v936 = vmax.f32 %v888, 0.0
    %v937 = vmax.f32 %v889, 0.0
    %v938 = vmax.f32 %v890, 0.0
    %v939 = vmax.f32 %v891, 0.0
    %v940 = vmax.f32 %v892, 0.0
    %v941 = vmax.f32 %v893, 0.0
    %v942 = vmax.f32 %v894, 0.0
    %v943 = vmax.f32 %v895, 0.0
    %v944 = vmax.f32 %v896, 0.0
    %v945 = vmax.f32 %v897, 0.0
    %v946 = vmax.f32 %v898, 0.0
    %v947 = vmax.f32 %v899, 0.0
    %v948 = vmax.f32 %v900, 0.0
    %v949 = vld [vmem:[%s3] sm:$0x3]
    %v950 = vld [vmem:[%s4] sm:$0x3]
    %952 = vset.pattern.permute.xlu0 0
    %953 = vperm.xlu0 %952, %v950
    %v954 = vpop.permute.xlu0 %953
    %956 = vmatprep.subr.mxu0 %v902
    %957 = vmatpush1.msra.mxu0 %v901
    %958 = vmatprep.subr.mxu0 %v905
    %959 = vmatpush1.msra.mxu0 %v904
    %960 = vmatprep.subr.mxu0 %v908
    %961 = vmatpush1.msra.mxu0 %v907
    %962 = vmatprep.subr.mxu0 %v911
    %963 = vmatpush1.msra.mxu0 %v910
    %964 = vmatprep.subr.mxu0 %v914
    %965 = vmatpush1.msra.mxu0 %v913
    %966 = vmatprep.subr.mxu0 %v917
    %967 = vmatpush1.msra.mxu0 %v916
    %968 = vmatprep.subr.mxu0 %v920
    %969 = vmatpush1.msra.mxu0 %v919
    %970 = vmatprep.subr.mxu0 %v923
    %971 = vmatpush1.msra.mxu0 %v922
    %972 = vmatprep.subr.mxu0 %v926
    %973 = vmatpush1.msra.mxu0 %v925
    %974 = vmatprep.subr.mxu0 %v929
    %975 = vmatpush1.msra.mxu0 %v928
    %976 = vmatprep.subr.mxu0 %v932
    %977 = vmatpush1.msra.mxu0 %v931
    %978 = vmatprep.subr.mxu0 %v935
    %979 = vmatpush1.msra.mxu0 %v934
    %980 = vmatprep.subr.mxu0 %v938
    %981 = vmatpush1.msra.mxu0 %v937
    %982 = vmatprep.subr.mxu0 %v941
    %983 = vmatpush1.msra.mxu0 %v940
    %984 = vmatprep.subr.mxu0 %v944
    %985 = vmatpush1.msra.mxu0 %v943
    %986 = vmatprep.subr.mxu0 %v947
    %987 = vmatpush1.msra.mxu0 %v946
    %988 = vmatprep.subr.mxu0 0.0
    %989 = vmatpush1.msra.mxu0 0.0
    %990 = vmatprep.subr.mxu0 0.0
    %991 = vmatpush1.msra.mxu0 0.0
    %992 = vmatprep.subr.mxu0 0.0
    %993 = vmatpush1.msra.mxu0 0.0
    %994 = vmatprep.subr.mxu0 0.0
    %995 = vmatpush1.msra.mxu0 0.0
    %996 = vmatprep.subr.mxu0 0.0
    %997 = vmatpush1.msra.mxu0 0.0
    %998 = vmatprep.subr.mxu0 0.0
    %999 = vmatpush1.msra.mxu0 0.0
    %1000 = vmatprep.subr.mxu0 0.0
    %1001 = vmatpush1.msra.mxu0 0.0
    %1002 = vmatprep.subr.mxu0 0.0
    %1003 = vmatpush1.msra.mxu0 0.0
    %1004 = vmatprep.subr.mxu0 0.0
    %1005 = vmatpush1.msra.mxu0 0.0
    %1006 = vmatprep.subr.mxu0 0.0
    %1007 = vmatpush1.msra.mxu0 0.0
    %1008 = vmatprep.subr.mxu0 0.0
    %1009 = vmatpush1.msra.mxu0 0.0
    %1010 = vmatprep.subr.mxu0 0.0
    %1011 = vmatpush1.msra.mxu0 0.0
    %1012 = vmatprep.subr.mxu0 0.0
    %1013 = vmatpush1.msra.mxu0 0.0
    %1014 = vmatprep.subr.mxu0 0.0
    %1015 = vmatpush1.msra.mxu0 0.0
    %1016 = vmatprep.subr.mxu0 0.0
    %1017 = vmatpush1.msra.mxu0 0.0
    %1018 = vmatprep.subr.mxu0 0.0
    %1019 = vmatpush1.msra.mxu0 0.0
    %1020 = vmatprep.mubr.f32.mxu0 0.0
    %1021 = vmatmul.mubr.f32.gmra.mrb[0].mxu0 %v949
    %v1022 = vpop.f32.mrb[0].mxu0
    %v1023 = vadd.f32 %v954, %v1022
    %v1024 = vpop.f32.mrb[0].mxu0
    %v1025 = vadd.f32 %v954, %v1024
    %1026 = vdwg.mxu0
    %1027 = vmatprep.subr.mxu0 0.0
    %1028 = vmatpush1.msra.mxu0 %v903
    %1029 = vmatprep.subr.mxu0 0.0
    %1030 = vmatpush1.msra.mxu0 %v906
    %1031 = vmatprep.subr.mxu0 0.0
    %1032 = vmatpush1.msra.mxu0 %v909
    %1033 = vmatprep.subr.mxu0 0.0
    %1034 = vmatpush1.msra.mxu0 %v912
    %1035 = vmatprep.subr.mxu0 0.0
    %1036 = vmatpush1.msra.mxu0 %v915
    %1037 = vmatprep.subr.mxu0 0.0
    %1038 = vmatpush1.msra.mxu0 %v918
    %1039 = vmatprep.subr.mxu0 0.0
    %1040 = vmatpush1.msra.mxu0 %v921
    %1041 = vmatprep.subr.mxu0 0.0
    %1042 = vmatpush1.msra.mxu0 %v924
    %1043 = vmatprep.subr.mxu0 0.0
    %1044 = vmatpush1.msra.mxu0 %v927
    %1045 = vmatprep.subr.mxu0 0.0
    %1046 = vmatpush1.msra.mxu0 %v930
    %1047 = vmatprep.subr.mxu0 0.0
    %1048 = vmatpush1.msra.mxu0 %v933
    %1049 = vmatprep.subr.mxu0 0.0
    %1050 = vmatpush1.msra.mxu0 %v936
    %1051 = vmatprep.subr.mxu0 0.0
    %1052 = vmatpush1.msra.mxu0 %v939
    %1053 = vmatprep.subr.mxu0 0.0
    %1054 = vmatpush1.msra.mxu0 %v942
    %1055 = vmatprep.subr.mxu0 0.0
    %1056 = vmatpush1.msra.mxu0 %v945
    %1057 = vmatprep.subr.mxu0 0.0
    %1058 = vmatpush1.msra.mxu0 %v948
    %1059 = vmatprep.subr.mxu0 0.0
    %1060 = vmatpush1.msra.mxu0 0.0
    %1061 = vmatprep.subr.mxu0 0.0
    %1062 = vmatpush1.msra.mxu0 0.0
    %1063 = vmatprep.subr.mxu0 0.0
    %1064 = vmatpush1.msra.mxu0 0.0
    %1065 = vmatprep.subr.mxu0 0.0
    %1066 = vmatpush1.msra.mxu0 0.0
    %1067 = vmatprep.subr.mxu0 0.0
    %1068 = vmatpush1.msra.mxu0 0.0
    %1069 = vmatprep.subr.mxu0 0.0
    %1070 = vmatpush1.msra.mxu0 0.0
    %1071 = vmatprep.subr.mxu0 0.0
    %1072 = vmatpush1.msra.mxu0 0.0
    %1073 = vmatprep.subr.mxu0 0.0
    %1074 = vmatpush1.msra.mxu0 0.0
    %1075 = vmatprep.subr.mxu0 0.0
    %1076 = vmatpush1.msra.mxu0 0.0
    %1077 = vmatprep.subr.mxu0 0.0
    %1078 = vmatpush1.msra.mxu0 0.0
    %1079 = vmatprep.subr.mxu0 0.0
    %1080 = vmatpush1.msra.mxu0 0.0
    %1081 = vmatprep.subr.mxu0 0.0
    %1082 = vmatpush1.msra.mxu0 0.0
    %1083 = vmatprep.subr.mxu0 0.0
    %1084 = vmatpush1.msra.mxu0 0.0
    %1085 = vmatprep.subr.mxu0 0.0
    %1086 = vmatpush1.msra.mxu0 0.0
    %1087 = vmatprep.subr.mxu0 0.0
    %1088 = vmatpush1.msra.mxu0 0.0
    %1089 = vmatprep.subr.mxu0 0.0
    %1090 = vmatpush1.msra.mxu0 0.0
    %1091 = vmatprep.mubr.f32.mxu0 0.0
    %1092 = vmatmul.mubr.f32.gmra.mrb[0].mxu0 %v949
    %v1093 = vpop.f32.mrb[0].mxu0
    %v1094 = vadd.f32 %v954, %v1093
    %v1095 = vpop.f32.mrb[0].mxu0
    %1096 = vdwg.mxu0
    %vm1097 = vcmask 1041408
    %v1098 = vsel %vm1097, %v1023, -inf
    %v1099 = vrot.slane %v1098, 4
    %v1100 = vmax.f32 %v1098, %v1099
    %v1101 = vrot.slane %v1100, 2
    %v1102 = vmax.f32 %v1100, %v1101
    %v1103 = vrot.slane %v1102, 1
    %v1104 = vmax.f32 %v1102, %v1103
    %v1105 = vsel %vm1097, %v1025, -inf
    %v1106 = vrot.slane %v1105, 4
    %v1107 = vmax.f32 %v1105, %v1106
    %v1108 = vrot.slane %v1107, 2
    %v1109 = vmax.f32 %v1107, %v1108
    %v1110 = vrot.slane %v1109, 1
    %v1111 = vmax.f32 %v1109, %v1110
    %v1112 = vsel %vm1097, %v1094, -inf
    %v1113 = vrot.slane %v1112, 4
    %v1114 = vmax.f32 %v1112, %v1113
    %v1115 = vrot.slane %v1114, 2
    %v1116 = vmax.f32 %v1114, %v1115
    %v1117 = vrot.slane %v1116, 1
    %v1118 = vmax.f32 %v1116, %v1117
    %v1119 = vsub.f32 %v1023, %v1104
    %v1120 = vsub.f32 %v1025, %v1111
    %v1121 = vsub.f32 %v1094, %v1118
    %v1122 = vmul.f32 %v1119, 1.442695
    %v1123 = vpow.pop %v1122
    %v1124 = vmul.f32 %v1120, 1.442695
    %v1125 = vpow.pop %v1124
    %v1126 = vmul.f32 %v1121, 1.442695
    %v1127 = vpow.pop %v1126
    %v1128 = vsel %vm1097, %v1123, 0.0
    %v1129 = vrot.slane %v1128, 4
    %v1130 = vadd.f32 %v1128, %v1129
    %v1131 = vrot.slane %v1130, 2
    %v1132 = vadd.f32 %v1130, %v1131
    %v1133 = vrot.slane %v1132, 1
    %v1134 = vadd.f32 %v1132, %v1133
    %v1135 = vsel %vm1097, %v1125, 0.0
    %v1136 = vrot.slane %v1135, 4
    %v1137 = vadd.f32 %v1135, %v1136
    %v1138 = vrot.slane %v1137, 2
    %v1139 = vadd.f32 %v1137, %v1138
    %v1140 = vrot.slane %v1139, 1
    %v1141 = vadd.f32 %v1139, %v1140
    %v1142 = vsel %vm1097, %v1127, 0.0
    %v1143 = vrot.slane %v1142, 4
    %v1144 = vadd.f32 %v1142, %v1143
    %v1145 = vrot.slane %v1144, 2
    %v1146 = vadd.f32 %v1144, %v1145
    %v1147 = vrot.slane %v1146, 1
    %v1148 = vadd.f32 %v1146, %v1147
    %v1149 = vrcp.pop %v1134
    %v1150 = vrcp.pop %v1141
    %v1151 = vrcp.pop %v1148
    %v1152 = vmul.f32 %v1123, %v1149
    %v1153 = vmul.f32 %v1125, %v1150
    %v1154 = vmul.f32 %v1127, %v1151
    %v1158 = vcombine.low %v1152, %v1153
    %v1160 = vunpack.c.l.s4 1983009808
    %v1161 = vunpack.c.0.s8 %v1160
    %v1162 = vlaneseq
    %v1163 = vshrl.u32 %v1162, 7
    %v1164 = vsub.s32 %v1161, %v1163
    %v1165 = vrot.slane %v1158, %v1164
    %v1167 = vunpack.c.l.s4 1983009808
    %v1168 = vunpack.c.0.s8 %v1167
    %v1169 = vlaneseq
    %v1170 = vshrl.u32 %v1169, 7
    %v1171 = vsub.s32 %v1168, %v1170
    %v1172 = vrot.slane %v1154, %v1171
    %v1173 = vcombine.low %v1165, %v1172
    %1175 = vst [vmem:[#allocation2] sm:$0x3f] %v1173
    // Predicated region
    $region22: #{tpu_custom_call.1} parent=1 // pred_check
      _
    $region23: #{tpu_custom_call.1} parent=1 // pred_check_branch
      %1177 = sbr.rel (0) target = $region25
    $region24: #{tpu_custom_call.1} parent=1 // pred_region
      %s1179 = ssub.s32 96, 96
      %1180 = vsyncadd [#allocation3], %s1179
      %s1182 = sshll.u32 [#allocation2], 4
      %s1183 = int_to_ptr.vmem [resolvable:$true] %s1182
      %1185 = dma.vmem_to_hbm [thread:$0]  %s1183, 96, %s5, [#allocation3]
    $region25: #{tpu_custom_call.1} parent=1 // pred_fallthru
      _
    // Predicated region
    $region26: #{tpu_custom_call.1} parent=1 // pred_check
      _
    $region27: #{tpu_custom_call.1} parent=1 // pred_check_branch
      %1187 = sbr.rel (0) target = $region29
    $region28: #{tpu_custom_call.1} parent=1 // pred_region
      %1188 = dma.done [#allocation3], 96
    $region29: #{tpu_custom_call.1} parent=1 // pred_fallthru
      _
    %1189 = vsyncpa [#allocation3], 1

</llo_original>
